<compile_context>
chip_gen: v5e
topology: v5e:2x2
jax: 0.10.0
libtpu: 0.0.40
codegen_flags: <defaults>
</compile_context>

<pallas_src>
import functools

import jax
import jax.numpy as jnp
from jax.experimental import pallas as pl
from jax.experimental.pallas import tpu as pltpu

_NEG_BIG = -1e30  # "minus infinity" for padded logit lanes (exp underflows to 0)


def _lstm_decoder_kernel(x_ref, h0_ref, c0_ref,
                         w_rec_ref, b_ref, w_lin_ref, b_lin_ref,
                         probs_ref, hc_ref,
                         h_scr, c_scr):
    """One grid step = one decoder time step. h/c live in VMEM scratch."""
    t = pl.program_id(0)
    H = h0_ref.shape[-1]

    # Step 0: seed the carried state from the encoder hidden/cell state.
    @pl.when(t == 0)
    def _():
        h_scr[...] = h0_ref[...]
        c_scr[...] = c0_ref[...]

    h = h_scr[...]
    c = c_scr[...]
    x = x_ref[...]                                   # (B, I), f32

    # Fused recurrence: (B, I+H) @ (I+H, 4H) in bf16 -> f32 acc, one MXU push.
    xh = jnp.concatenate([x, h], axis=1).astype(jnp.bfloat16)
    gates = (jnp.dot(xh, w_rec_ref[...], preferred_element_type=jnp.float32)
             + b_ref[...])                           # (B, 4H=128), f32

    # One full-vreg sigmoid; tanh only on the g slice.  All elementwise in f32.
    sig = jax.nn.sigmoid(gates)
    i_g = sig[:, 0 * H:1 * H]
    f_g = sig[:, 1 * H:2 * H]
    o_g = sig[:, 3 * H:4 * H]
    g_g = jnp.tanh(gates[:, 2 * H:3 * H])

    c1 = f_g * c + i_g * g_g
    h1 = o_g * jnp.tanh(c1)

    # Linear + softmax on a lane-padded (B, O_pad) block.  Padded lanes carry a
    # huge negative bias -> exp underflows to 0 -> zero probability.
    logits = (jnp.dot(h1.astype(jnp.bfloat16), w_lin_ref[...],
                      preferred_element_type=jnp.float32)
              + b_lin_ref[...])
    m = jnp.max(logits, axis=1, keepdims=True)
    e = jnp.exp(logits - m)
    probs_ref[...] = e / jnp.sum(e, axis=1, keepdims=True)   # exact divide

    # Carry state to the next step.
    h_scr[...] = h1
    c_scr[...] = c1

    # Lane-dense state writeback: single unmasked (B, 128) [h1|c1|pad] slab,
    # written once at the final step.
    @pl.when(t == pl.num_programs(0) - 1)
    def _():
        pad_w = hc_ref.shape[-1] - 2 * H
        pad = jnp.zeros((h1.shape[0], pad_w), jnp.float32)
        hc_ref[...] = jnp.concatenate([h1, c1, pad], axis=1)


@functools.partial(jax.jit, static_argnames=("output_size",))
def lstm_decoder_rollout(xs, h0, c0, w_rec, b, w_lin, b_lin, *, output_size):
    """Teacher-forced multi-step decode in ONE pallas_call.

    xs: (T, B, I); h0/c0: (1, B, H) (PyTorch convention).
    Returns probs (T, B, O) and final (h, c) each (1, B, H).
    """
    T, B, I = xs.shape
    H = h0.shape[-1]
    O_pad = w_lin.shape[-1]
    state_pad = ((2 * H + 127) // 128) * 128         # lane-dense [h|c|pad] slab

    grid_spec = pltpu.PrefetchScalarGridSpec(
        num_scalar_prefetch=0,
        grid=(T,),
        in_specs=[
            pl.BlockSpec((None, B, I), lambda t: (t, 0, 0)),     # x_t, per step
            pl.BlockSpec((B, H), lambda t: (0, 0)),              # h0 (resident)
            pl.BlockSpec((B, H), lambda t: (0, 0)),              # c0 (resident)
            pl.BlockSpec((I + H, 4 * H), lambda t: (0, 0)),      # w_rec (resident)
            pl.BlockSpec((1, 4 * H), lambda t: (0, 0)),          # b     (resident)
            pl.BlockSpec((H, O_pad), lambda t: (0, 0)),          # w_lin (resident)
            pl.BlockSpec((1, O_pad), lambda t: (0, 0)),          # b_lin (resident)
        ],
        out_specs=[
            pl.BlockSpec((None, B, O_pad), lambda t: (t, 0, 0)),  # probs per step
            pl.BlockSpec((B, state_pad), lambda t: (0, 0)),       # [h|c|pad] slab
        ],
        scratch_shapes=[
            pltpu.VMEM((B, H), jnp.float32),   # carried h
            pltpu.VMEM((B, H), jnp.float32),   # carried c
        ],
    )

    probs_pad, hc = pl.pallas_call(
        _lstm_decoder_kernel,
        grid_spec=grid_spec,
        out_shape=(
            jax.ShapeDtypeStruct((T, B, O_pad), jnp.float32),
            jax.ShapeDtypeStruct((B, state_pad), jnp.float32),
        ),
        compiler_params=pltpu.CompilerParams(
            dimension_semantics=("arbitrary",),      # h/c carry across steps
            vmem_limit_bytes=32 * 1024 * 1024,       # explicit, v7x-safe budget
        ),
    )(xs, h0[0], c0[0], w_rec, b, w_lin, b_lin)

    probs = probs_pad[:, :, :output_size]
    h1 = hc[:, 0 * H:1 * H]
    c1 = hc[:, 1 * H:2 * H]
    return probs, (h1[None], c1[None])


def lstm_decoder_forward(x, h0, c0, w_rec, b, w_lin, b_lin, *, output_size):
    """Matches lstm_decoder.forward: x (B, I) -> (probs (B, O), (h1, c1))."""
    probs_seq, hidden = lstm_decoder_rollout(
        x[None], h0, c0, w_rec, b, w_lin, b_lin, output_size=output_size)
    return probs_seq[0], hidden


def init_raw_params(key, input_size, hidden_size, output_size):
    """Deterministic init matching nn.LSTM / nn.Linear shapes (uniform +/- 1/sqrt(H))."""
    k = 1.0 / jnp.sqrt(jnp.float32(hidden_size))
    keys = jax.random.split(key, 6)
    weight_ih = jax.random.uniform(keys[0], (4 * hidden_size, input_size),
                                   jnp.float32, -k, k)
    weight_hh = jax.random.uniform(keys[1], (4 * hidden_size, hidden_size),
                                   jnp.float32, -k, k)
    bias_ih = jax.random.uniform(keys[2], (4 * hidden_size,), jnp.float32, -k, k)
    bias_hh = jax.random.uniform(keys[3], (4 * hidden_size,), jnp.float32, -k, k)
    lin_w = jax.random.uniform(keys[4], (output_size, hidden_size), jnp.float32, -k, k)
    lin_b = jax.random.uniform(keys[5], (output_size,), jnp.float32, -k, k)
    return weight_ih, weight_hh, bias_ih, bias_hh, lin_w, lin_b


def pack_params(weight_ih, weight_hh, bias_ih, bias_hh, lin_w, lin_b,
                input_size, hidden_size, output_size):
    """Repack PyTorch-layout params into the kernel's fused, lane-dense, bf16 layout."""
    H = hidden_size
    # Fused recurrence weights: [x | h] @ w_rec == x @ W_ih.T + h @ W_hh.T.
    # Gate columns stay in PyTorch order (i, f, g, o), each H wide.
    w_rec = jnp.concatenate([weight_ih.T, weight_hh.T], axis=0).astype(jnp.bfloat16)
    b = (bias_ih + bias_hh).reshape(1, 4 * H).astype(jnp.float32)

    # Linear weights, lane-padded to a multiple of 128; padded bias lanes get a
    # huge negative value so softmax assigns them exactly zero probability.
    o_pad = ((output_size + 127) // 128) * 128
    w_lin = (jnp.zeros((H, o_pad), jnp.float32)
             .at[:, :output_size].set(lin_w.T).astype(jnp.bfloat16))
    b_lin = jnp.full((1, o_pad), _NEG_BIG, jnp.float32).at[0, :output_size].set(lin_b)
    return w_rec, b, w_lin, b_lin


def reference_forward(x, h0, c0, weight_ih, weight_hh, bias_ih, bias_hh, lin_w, lin_b):
    """Pure-JAX f32 reference using the raw PyTorch parameter layout."""
    h, c = h0[0], c0[0]
    H = h.shape[-1]
    gates = x @ weight_ih.T + h @ weight_hh.T + bias_ih + bias_hh
    i_g = jax.nn.sigmoid(gates[:, 0 * H:1 * H])
    f_g = jax.nn.sigmoid(gates[:, 1 * H:2 * H])
    g_g = jnp.tanh(gates[:, 2 * H:3 * H])
    o_g = jax.nn.sigmoid(gates[:, 3 * H:4 * H])
    c1 = f_g * c + i_g * g_g
    h1 = o_g * jnp.tanh(c1)
    logits = h1 @ lin_w.T + lin_b
    probs = jax.nn.softmax(logits, axis=1)
    return probs, (h1[None], c1[None])


def packed_step_reference(x, h, c, w_rec, b, w_lin, b_lin, output_size):
    """Pure-JAX step that mirrors the kernel's numerics (bf16 dots, f32 elsewhere)."""
    H = h.shape[-1]
    xh = jnp.concatenate([x, h], axis=1).astype(jnp.bfloat16)
    gates = jnp.dot(xh, w_rec, preferred_element_type=jnp.float32) + b
    sig = jax.nn.sigmoid(gates)
    i_g, f_g, o_g = sig[:, :H], sig[:, H:2 * H], sig[:, 3 * H:]
    g_g = jnp.tanh(gates[:, 2 * H:3 * H])
    c1 = f_g * c + i_g * g_g
    h1 = o_g * jnp.tanh(c1)
    logits = (jnp.dot(h1.astype(jnp.bfloat16), w_lin,
                      preferred_element_type=jnp.float32) + b_lin)
    m = jnp.max(logits, axis=1, keepdims=True)
    e = jnp.exp(logits - m)
    probs = e / jnp.sum(e, axis=1, keepdims=True)
    return probs[:, :output_size], h1, c1


if __name__ == "__main__":
    B, I, H, O = 8, 16, 32, 24   # batch, input_size, hidden_size, output_size
    T = 4                        # multi-step fused-rollout demo (forward == T=1)

    key = jax.random.PRNGKey(0)
    k_x, k_h, k_c, k_p, k_s = jax.random.split(key, 5)

    x = jax.random.normal(k_x, (B, I), jnp.float32)
    h0 = jax.random.normal(k_h, (1, B, H), jnp.float32)   # encoder hidden state
    c0 = jax.random.normal(k_c, (1, B, H), jnp.float32)   # encoder cell state

    raw = init_raw_params(k_p, I, H, O)
    packed = pack_params(*raw, I, H, O)

    # --- Single step (module forward semantics) -----------------------------
    probs, (h1, c1) = lstm_decoder_forward(x, h0, c0, *packed, output_size=O)
    jax.block_until_ready((probs, h1, c1))
    assert probs.shape == (B, O) and h1.shape == (1, B, H) and c1.shape == (1, B, H)

    # Tight check against a reference that mirrors the kernel numerics.
    mp, mh, mc = packed_step_reference(x, h0[0], c0[0], *packed, O)
    assert jnp.allclose(h1[0], mh, atol=5e-4, rtol=1e-3)
    assert jnp.allclose(c1[0], mc, atol=5e-4, rtol=1e-3)
    assert jnp.allclose(probs, mp, atol=5e-4, rtol=1e-3)

    # Loose check against the full-f32 PyTorch-layout reference (bf16 MXU inputs).
    fp, (fh, fc) = reference_forward(x, h0, c0, *raw)
    assert jnp.allclose(h1, fh, atol=2e-2)
    assert jnp.allclose(c1, fc, atol=2e-2)
    assert jnp.allclose(probs, fp, atol=2e-2)
    assert jnp.allclose(jnp.sum(probs, axis=1), jnp.ones((B,)), atol=1e-5)

    # --- Fused multi-step rollout (weights + h/c resident across T steps) ---
    xs = jax.random.normal(k_s, (T, B, I), jnp.float32)
    probs_seq, (hT, cT) = lstm_decoder_rollout(xs, h0, c0, *packed, output_size=O)
    jax.block_until_ready((probs_seq, hT, cT))

    rh, rc = h0[0], c0[0]
    ref_ps = []
    for t in range(T):
        p_t, rh, rc = packed_step_reference(xs[t], rh, rc, *packed, O)
        ref_ps.append(p_t)
    assert jnp.allclose(probs_seq, jnp.stack(ref_ps), atol=2e-3, rtol=2e-3)
    assert jnp.allclose(hT[0], rh, atol=2e-3, rtol=2e-3)
    assert jnp.allclose(cT[0], rc, atol=2e-3, rtol=2e-3)

    print("KERNEL_OK")
</pallas_src>

<mosaic_0001>
module attributes {stable_mosaic.version = 11 : i64} {
  func.func @_lstm_decoder_kernel(%arg0: i32, %arg1: memref<1x8x16xf32, #tpu.memory_space<vmem>>, %arg2: memref<8x32xf32, #tpu.memory_space<vmem>>, %arg3: memref<8x32xf32, #tpu.memory_space<vmem>>, %arg4: memref<48x128xbf16, #tpu.memory_space<vmem>>, %arg5: memref<1x128xf32, #tpu.memory_space<vmem>>, %arg6: memref<32x128xbf16, #tpu.memory_space<vmem>>, %arg7: memref<1x128xf32, #tpu.memory_space<vmem>>, %arg8: memref<1x8x128xf32, #tpu.memory_space<vmem>>, %arg9: memref<8x128xf32, #tpu.memory_space<vmem>>, %arg10: memref<8x32xf32, #tpu.memory_space<vmem>>, %arg11: memref<8x32xf32, #tpu.memory_space<vmem>>) attributes {dimension_semantics = [#tpu.dimension_semantics<arbitrary>], iteration_bounds = array<i64: 1>, scalar_prefetch = 0 : i64, scratch_operands = 2 : i64, tpu.core_type = #tpu.core_type<tc>, window_params = [{transform_indices = @transform_0, window_bounds = array<i64: 1, 8, 16>}, {pipeline_mode = #tpu.pipeline_mode<synchronous>, transform_indices = @transform_1, window_bounds = array<i64: 8, 32>}, {pipeline_mode = #tpu.pipeline_mode<synchronous>, transform_indices = @transform_2, window_bounds = array<i64: 8, 32>}, {pipeline_mode = #tpu.pipeline_mode<synchronous>, transform_indices = @transform_3, window_bounds = array<i64: 48, 128>}, {pipeline_mode = #tpu.pipeline_mode<synchronous>, transform_indices = @transform_4, window_bounds = array<i64: 1, 128>}, {pipeline_mode = #tpu.pipeline_mode<synchronous>, transform_indices = @transform_5, window_bounds = array<i64: 32, 128>}, {pipeline_mode = #tpu.pipeline_mode<synchronous>, transform_indices = @transform_6, window_bounds = array<i64: 1, 128>}, {transform_indices = @transform_7, window_bounds = array<i64: 1, 8, 128>}, {pipeline_mode = #tpu.pipeline_mode<synchronous>, transform_indices = @transform_8, window_bounds = array<i64: 8, 128>}]} {
    %c0_i32 = arith.constant 0 : i32
    %0 = arith.cmpi eq, %arg0, %c0_i32 : i32
    %1 = arith.extui %0 : i1 to i32
    %c0_i32_0 = arith.constant 0 : i32
    %2 = arith.cmpi ne, %1, %c0_i32_0 : i32
    scf.if %2 {
      %c0_28 = arith.constant 0 : index
      %c0_29 = arith.constant 0 : index
      %52 = vector.load %arg2[%c0_28, %c0_29] : memref<8x32xf32, #tpu.memory_space<vmem>>, vector<8x32xf32>
      %c0_30 = arith.constant 0 : index
      %c0_31 = arith.constant 0 : index
      %53 = vector.load %arg10[%c0_30, %c0_31] : memref<8x32xf32, #tpu.memory_space<vmem>>, vector<8x32xf32>
      tpu.vector_store %arg10[%c0_30, %c0_31], %52 {strides = array<i32>} : memref<8x32xf32, #tpu.memory_space<vmem>>, vector<8x32xf32>,
      %c0_32 = arith.constant 0 : index
      %c0_33 = arith.constant 0 : index
      %54 = vector.load %arg3[%c0_32, %c0_33] : memref<8x32xf32, #tpu.memory_space<vmem>>, vector<8x32xf32>
      %c0_34 = arith.constant 0 : index
      %c0_35 = arith.constant 0 : index
      %55 = vector.load %arg11[%c0_34, %c0_35] : memref<8x32xf32, #tpu.memory_space<vmem>>, vector<8x32xf32>
      tpu.vector_store %arg11[%c0_34, %c0_35], %54 {strides = array<i32>} : memref<8x32xf32, #tpu.memory_space<vmem>>, vector<8x32xf32>,
    } else {
    }
    %c0 = arith.constant 0 : index
    %c0_1 = arith.constant 0 : index
    %3 = vector.load %arg10[%c0, %c0_1] : memref<8x32xf32, #tpu.memory_space<vmem>>, vector<8x32xf32>
    %c0_2 = arith.constant 0 : index
    %c0_3 = arith.constant 0 : index
    %4 = vector.load %arg11[%c0_2, %c0_3] : memref<8x32xf32, #tpu.memory_space<vmem>>, vector<8x32xf32>
    %c0_4 = arith.constant 0 : index
    %c0_5 = arith.constant 0 : index
    %c0_6 = arith.constant 0 : index
    %5 = vector.load %arg1[%c0_4, %c0_5, %c0_6] : memref<1x8x16xf32, #tpu.memory_space<vmem>>, vector<1x8x16xf32>
    %6 = vector.shape_cast %5 : vector<1x8x16xf32> to vector<8x16xf32>
    %7 = tpu.concatenate %6, %3 in 1 : vector<8x16xf32>, vector<8x32xf32> -> vector<8x48xf32>
    %8 = arith.truncf %7 : vector<8x48xf32> to vector<8x48xbf16>
    %c0_7 = arith.constant 0 : index
    %c0_8 = arith.constant 0 : index
    %9 = vector.load %arg4[%c0_7, %c0_8] : memref<48x128xbf16, #tpu.memory_space<vmem>>, vector<48x128xbf16>
    %cst = arith.constant dense<0.000000e+00> : vector<8x128xf32>
    %10 = tpu.matmul %8, %9, %cst {dimension_numbers = #tpu.dot_dimension_numbers<[1], [0], [0], [1], [0, 0, 1, 1], [], []>} : vector<8x48xbf16>, vector<48x128xbf16>, vector<8x128xf32> -> vector<8x128xf32>
    %c0_9 = arith.constant 0 : index
    %c0_10 = arith.constant 0 : index
    %11 = vector.load %arg5[%c0_9, %c0_10] : memref<1x128xf32, #tpu.memory_space<vmem>>, vector<1x128xf32>
    %12 = vector.broadcast %11 : vector<1x128xf32> to vector<8x128xf32>
    %13 = arith.addf %10, %12 : vector<8x128xf32>
    %14 = arith.negf %13 : vector<8x128xf32>
    %15 = math.exp %14 : vector<8x128xf32>
    %cst_11 = arith.constant 1.000000e+00 : f32
    %16 = vector.broadcast %cst_11 : f32 to vector<8x128xf32>
    %17 = arith.addf %16, %15 : vector<8x128xf32>
    %18 = arith.divf %16, %17 : vector<8x128xf32>
    %19 = vector.extract_strided_slice %18 {offsets = [0, 0], sizes = [8, 32], strides = [1, 1]} : vector<8x128xf32> to vector<8x32xf32>
    %20 = vector.extract_strided_slice %18 {offsets = [0, 32], sizes = [8, 32], strides = [1, 1]} : vector<8x128xf32> to vector<8x32xf32>
    %21 = vector.extract_strided_slice %18 {offsets = [0, 96], sizes = [8, 32], strides = [1, 1]} : vector<8x128xf32> to vector<8x32xf32>
    %22 = vector.extract_strided_slice %13 {offsets = [0, 64], sizes = [8, 32], strides = [1, 1]} : vector<8x128xf32> to vector<8x32xf32>
    %23 = math.tanh %22 : vector<8x32xf32>
    %24 = arith.mulf %20, %4 : vector<8x32xf32>
    %25 = arith.mulf %19, %23 : vector<8x32xf32>
    %26 = arith.addf %24, %25 : vector<8x32xf32>
    %27 = math.tanh %26 : vector<8x32xf32>
    %28 = arith.mulf %21, %27 : vector<8x32xf32>
    %29 = arith.truncf %28 : vector<8x32xf32> to vector<8x32xbf16>
    %c0_12 = arith.constant 0 : index
    %c0_13 = arith.constant 0 : index
    %30 = vector.load %arg6[%c0_12, %c0_13] : memref<32x128xbf16, #tpu.memory_space<vmem>>, vector<32x128xbf16>
    %cst_14 = arith.constant dense<0.000000e+00> : vector<8x128xf32>
    %31 = tpu.matmul %29, %30, %cst_14 {dimension_numbers = #tpu.dot_dimension_numbers<[1], [0], [0], [1], [0, 0, 1, 1], [], []>} : vector<8x32xbf16>, vector<32x128xbf16>, vector<8x128xf32> -> vector<8x128xf32>
    %c0_15 = arith.constant 0 : index
    %c0_16 = arith.constant 0 : index
    %32 = vector.load %arg7[%c0_15, %c0_16] : memref<1x128xf32, #tpu.memory_space<vmem>>, vector<1x128xf32>
    %33 = vector.broadcast %32 : vector<1x128xf32> to vector<8x128xf32>
    %34 = arith.addf %31, %33 : vector<8x128xf32>
    %cst_17 = arith.constant dense<0xFF800000> : vector<8xf32>
    %35 = vector.multi_reduction <maximumf>, %34, %cst_17 [1] : vector<8x128xf32> to vector<8xf32>
    %36 = vector.shape_cast %35 : vector<8xf32> to vector<8x1xf32>
    %37 = vector.broadcast %36 : vector<8x1xf32> to vector<8x128xf32>
    %38 = arith.subf %34, %37 : vector<8x128xf32>
    %39 = math.exp %38 : vector<8x128xf32>
    %cst_18 = arith.constant dense<0.000000e+00> : vector<8xf32>
    %40 = vector.multi_reduction <add>, %39, %cst_18 [1] : vector<8x128xf32> to vector<8xf32>
    %41 = vector.shape_cast %40 : vector<8xf32> to vector<8x1xf32>
    %42 = vector.broadcast %41 : vector<8x1xf32> to vector<8x128xf32>
    %43 = arith.divf %39, %42 : vector<8x128xf32>
    %c0_19 = arith.constant 0 : index
    %c0_20 = arith.constant 0 : index
    %c0_21 = arith.constant 0 : index
    %44 = vector.load %arg8[%c0_19, %c0_20, %c0_21] : memref<1x8x128xf32, #tpu.memory_space<vmem>>, vector<1x8x128xf32>
    %45 = vector.shape_cast %44 : vector<1x8x128xf32> to vector<8x128xf32>
    %46 = vector.shape_cast %43 : vector<8x128xf32> to vector<1x8x128xf32>
    tpu.vector_store %arg8[%c0_19, %c0_20, %c0_21], %46 {strides = array<i32>} : memref<1x8x128xf32, #tpu.memory_space<vmem>>, vector<1x8x128xf32>,
    %c0_22 = arith.constant 0 : index
    %c0_23 = arith.constant 0 : index
    %47 = vector.load %arg10[%c0_22, %c0_23] : memref<8x32xf32, #tpu.memory_space<vmem>>, vector<8x32xf32>
    tpu.vector_store %arg10[%c0_22, %c0_23], %28 {strides = array<i32>} : memref<8x32xf32, #tpu.memory_space<vmem>>, vector<8x32xf32>,
    %c0_24 = arith.constant 0 : index
    %c0_25 = arith.constant 0 : index
    %48 = vector.load %arg11[%c0_24, %c0_25] : memref<8x32xf32, #tpu.memory_space<vmem>>, vector<8x32xf32>
    tpu.vector_store %arg11[%c0_24, %c0_25], %26 {strides = array<i32>} : memref<8x32xf32, #tpu.memory_space<vmem>>, vector<8x32xf32>,
    %c0_i32_26 = arith.constant 0 : i32
    %49 = arith.cmpi eq, %arg0, %c0_i32_26 : i32
    %50 = arith.extui %49 : i1 to i32
    %c0_i32_27 = arith.constant 0 : i32
    %51 = arith.cmpi ne, %50, %c0_i32_27 : i32
    scf.if %51 {
      %cst_28 = arith.constant 0.000000e+00 : f32
      %52 = vector.broadcast %cst_28 : f32 to vector<8x64xf32>
      %53 = tpu.concatenate %28, %26, %52 in 1 : vector<8x32xf32>, vector<8x32xf32>, vector<8x64xf32> -> vector<8x128xf32>
      %c0_29 = arith.constant 0 : index
      %c0_30 = arith.constant 0 : index
      %54 = vector.load %arg9[%c0_29, %c0_30] : memref<8x128xf32, #tpu.memory_space<vmem>>, vector<8x128xf32>
      tpu.vector_store %arg9[%c0_29, %c0_30], %53 {strides = array<i32>} : memref<8x128xf32, #tpu.memory_space<vmem>>, vector<8x128xf32>,
    } else {
    }
    return
  }
  func.func @transform_0(%arg0: i32) -> (i32, i32, i32) {
    %c0_i32 = arith.constant 0 : i32
    %c0_i32_0 = arith.constant 0 : i32
    %c0_i32_1 = arith.constant 0 : i32
    return %arg0, %c0_i32, %c0_i32_0 : i32, i32, i32
  }
  func.func @transform_1(%arg0: i32) -> (i32, i32) {
    %c0_i32 = arith.constant 0 : i32
    %c0_i32_0 = arith.constant 0 : i32
    %c0_i32_1 = arith.constant 0 : i32
    return %c0_i32, %c0_i32_0 : i32, i32
  }
  func.func @transform_2(%arg0: i32) -> (i32, i32) {
    %c0_i32 = arith.constant 0 : i32
    %c0_i32_0 = arith.constant 0 : i32
    %c0_i32_1 = arith.constant 0 : i32
    return %c0_i32, %c0_i32_0 : i32, i32
  }
  func.func @transform_3(%arg0: i32) -> (i32, i32) {
    %c0_i32 = arith.constant 0 : i32
    %c0_i32_0 = arith.constant 0 : i32
    %c0_i32_1 = arith.constant 0 : i32
    return %c0_i32, %c0_i32_0 : i32, i32
  }
  func.func @transform_4(%arg0: i32) -> (i32, i32) {
    %c0_i32 = arith.constant 0 : i32
    %c0_i32_0 = arith.constant 0 : i32
    %c0_i32_1 = arith.constant 0 : i32
    return %c0_i32, %c0_i32_0 : i32, i32
  }
  func.func @transform_5(%arg0: i32) -> (i32, i32) {
    %c0_i32 = arith.constant 0 : i32
    %c0_i32_0 = arith.constant 0 : i32
    %c0_i32_1 = arith.constant 0 : i32
    return %c0_i32, %c0_i32_0 : i32, i32
  }
  func.func @transform_6(%arg0: i32) -> (i32, i32) {
    %c0_i32 = arith.constant 0 : i32
    %c0_i32_0 = arith.constant 0 : i32
    %c0_i32_1 = arith.constant 0 : i32
    return %c0_i32, %c0_i32_0 : i32, i32
  }
  func.func @transform_7(%arg0: i32) -> (i32, i32, i32) {
    %c0_i32 = arith.constant 0 : i32
    %c0_i32_0 = arith.constant 0 : i32
    %c0_i32_1 = arith.constant 0 : i32
    return %arg0, %c0_i32, %c0_i32_0 : i32, i32, i32
  }
  func.func @transform_8(%arg0: i32) -> (i32, i32) {
    %c0_i32 = arith.constant 0 : i32
    %c0_i32_0 = arith.constant 0 : i32
    %c0_i32_1 = arith.constant 0 : i32
    return %c0_i32, %c0_i32_0 : i32, i32
  }
}

</mosaic_0001>

<llo_original>
// kernel: lstm_decoder_rollout.1
$region0: #{lstm_decoder_rollout.1}
  #allocation0 [shape = 'u32[]', space=smem, size = 0x4, offset = 0x4, fixed_abs, tag = 'smem constant byte address 0x4 - core index']
  #allocation1 [shape = 'u32[72,128]{1,0:T(1,128)}', space=vmem, size = 0x9000, scoped, tag = 'internal scratch']
  #allocation2 [shape = 'f32[8,32]{1,0:T(8,128)}', space=vmem, size = 0x1000, scoped, tag = 'scratch operand']
  #allocation3 [shape = 'f32[8,32]{1,0:T(8,128)}', space=vmem, size = 0x1000, scoped, tag = 'scratch operand']
  %s0 = inlined_call_operand.hbm [shape: f32[1,8,16], index: 0, kind: input, shape index: {}]
  %s1 = inlined_call_operand.hbm [shape: f32[8,32], index: 1, kind: input, shape index: {}]
  %s2 = inlined_call_operand.hbm [shape: f32[8,32], index: 2, kind: input, shape index: {}]
  %s3 = inlined_call_operand.hbm [shape: bf16[48,128], index: 3, kind: input, shape index: {}]
  %s4 = inlined_call_operand.vmem [shape: f32[1,128], index: 4, kind: input, shape index: {}]
  %s5 = inlined_call_operand.hbm [shape: bf16[32,128], index: 5, kind: input, shape index: {}]
  %s6 = inlined_call_operand.vmem [shape: f32[1,128], index: 6, kind: input, shape index: {}]
  %s7 = inlined_call_operand.hbm [shape: f32[1,8,128], index: 7, kind: output, shape index: {0}]
  %s8 = inlined_call_operand.vmem [shape: f32[8,128], index: 8, kind: output, shape index: {1}]
  %9 = xla_tuple %s7, %s8
  %s10 = sld [smem:[#allocation0]]
  $region74: #{lstm_decoder_rollout.1} parent=0
    _
  %s12 = ssub.s32 1, %s10
  %s13 = scalar_select 0, %s12, %s10
  $region1: #{lstm_decoder_rollout.1} parent=0
    #allocation4 [shape = 'u8[4096]{0}', space=vmem, size = 0x1000, scoped, tag = 'input window, operand 0, single buffered']
    #allocation5 [shape = 's32[1]{0}', space=sflag, size = 0x4, scoped, tag = 'scoped memory for lstm_decoder_rollout.1']
    #allocation6 [shape = 's32[1]{0}', space=sflag, size = 0x4, scoped, tag = 'scoped memory for lstm_decoder_rollout.1']
    #allocation7 [shape = 'u8[4096]{0}', space=vmem, size = 0x1000, scoped, tag = 'input window, operand 1, single buffered']
    #allocation8 [shape = 's32[1]{0}', space=sflag, size = 0x4, scoped, tag = 'scoped memory for lstm_decoder_rollout.1']
    #allocation9 [shape = 'u8[4096]{0}', space=vmem, size = 0x1000, scoped, tag = 'input window, operand 2, single buffered']
    #allocation10 [shape = 'u8[12288]{0}', space=vmem, size = 0x3000, scoped, tag = 'input window, operand 3, single buffered']
    #allocation11 [shape = 's32[1]{0}', space=sflag, size = 0x4, scoped, tag = 'scoped memory for lstm_decoder_rollout.1']
    #allocation12 [shape = 'u8[8192]{0}', space=vmem, size = 0x2000, scoped, tag = 'input window, operand 5, single buffered']
    #allocation13 [shape = 'u8[4096]{0}', space=vmem, size = 0x1000, scoped, tag = 'output window, operand 0, single buffered']
    %14 = vsyncpa [#allocation5], 0
    %15 = vsyncpa [#allocation8], 0
    %16 = vsyncpa [#allocation11], 0
    %17 = vsyncpa [#allocation6], 0
    // Predicated region
    $region2: #{lstm_decoder_rollout.1} parent=1 // pred_check
      _
    $region3: #{lstm_decoder_rollout.1} parent=1 // pred_check_branch
      %19 = sbr.rel (0) target = $region5
    $region4: #{lstm_decoder_rollout.1} parent=1 // pred_region
      %21 = vsyncadd [#allocation5], 0
      %s23 = sshll.u32 %s0, 4
      %s24 = int_to_ptr.hbm [resolvable:$true] %s23
      %s25 = sshll.u32 [#allocation4], 4
      %s26 = int_to_ptr.vmem [resolvable:$true] %s25
      %28 = dma.hbm_to_vmem [thread:$0]  %s24, 128, %s26, [#allocation5]
    $region5: #{lstm_decoder_rollout.1} parent=1 // pred_fallthru
      _
    // Predicated region
    $region6: #{lstm_decoder_rollout.1} parent=1 // pred_check
      _
    $region7: #{lstm_decoder_rollout.1} parent=1 // pred_check_branch
      %30 = sbr.rel (0) target = $region9
    $region8: #{lstm_decoder_rollout.1} parent=1 // pred_region
      %32 = vsyncadd [#allocation8], 0
      %s34 = sshll.u32 %s1, 4
      %s35 = int_to_ptr.hbm [resolvable:$true] %s34
      %s36 = sshll.u32 [#allocation7], 4
      %s37 = int_to_ptr.vmem [resolvable:$true] %s36
      %39 = dma.hbm_to_vmem [thread:$0]  %s35, 128, %s37, [#allocation8]
    $region9: #{lstm_decoder_rollout.1} parent=1 // pred_fallthru
      _
    // Predicated region
    $region10: #{lstm_decoder_rollout.1} parent=1 // pred_check
      _
    $region11: #{lstm_decoder_rollout.1} parent=1 // pred_check_branch
      %41 = sbr.rel (0) target = $region13
    $region12: #{lstm_decoder_rollout.1} parent=1 // pred_region
      %43 = vsyncadd [#allocation8], 0
      %s45 = sshll.u32 %s2, 4
      %s46 = int_to_ptr.hbm [resolvable:$true] %s45
      %s47 = sshll.u32 [#allocation9], 4
      %s48 = int_to_ptr.vmem [resolvable:$true] %s47
      %50 = dma.hbm_to_vmem [thread:$0]  %s46, 128, %s48, [#allocation8]
    $region13: #{lstm_decoder_rollout.1} parent=1 // pred_fallthru
      _
    // Predicated region
    $region14: #{lstm_decoder_rollout.1} parent=1 // pred_check
      _
    $region15: #{lstm_decoder_rollout.1} parent=1 // pred_check_branch
      %52 = sbr.rel (0) target = $region17
    $region16: #{lstm_decoder_rollout.1} parent=1 // pred_region
      %54 = vsyncadd [#allocation11], 0
      %s55 = sshll.u32 %s3, 4
      %s56 = int_to_ptr.hbm [resolvable:$true] %s55
      %s57 = sshll.u32 [#allocation10], 4
      %s58 = int_to_ptr.vmem [resolvable:$true] %s57
      %63 = dma.hbm_to_vmem [thread:$0]  %s56, 384, %s58, [#allocation11], 64, 64, 4
    $region17: #{lstm_decoder_rollout.1} parent=1 // pred_fallthru
      _
    // Predicated region
    $region18: #{lstm_decoder_rollout.1} parent=1 // pred_check
      _
    $region19: #{lstm_decoder_rollout.1} parent=1 // pred_check_branch
      %65 = sbr.rel (0) target = $region21
    $region20: #{lstm_decoder_rollout.1} parent=1 // pred_region
      _
    $region21: #{lstm_decoder_rollout.1} parent=1 // pred_fallthru
      _
    // Predicated region
    $region22: #{lstm_decoder_rollout.1} parent=1 // pred_check
      _
    $region23: #{lstm_decoder_rollout.1} parent=1 // pred_check_branch
      %67 = sbr.rel (0) target = $region25
    $region24: #{lstm_decoder_rollout.1} parent=1 // pred_region
      %69 = vsyncadd [#allocation11], 0
      %s70 = sshll.u32 %s5, 4
      %s71 = int_to_ptr.hbm [resolvable:$true] %s70
      %s72 = sshll.u32 [#allocation12], 4
      %s73 = int_to_ptr.vmem [resolvable:$true] %s72
      %78 = dma.hbm_to_vmem [thread:$0]  %s71, 256, %s73, [#allocation11], 64, 64, 4
    $region25: #{lstm_decoder_rollout.1} parent=1 // pred_fallthru
      _
    // Predicated region
    $region26: #{lstm_decoder_rollout.1} parent=1 // pred_check
      _
    $region27: #{lstm_decoder_rollout.1} parent=1 // pred_check_branch
      %80 = sbr.rel (0) target = $region29
    $region28: #{lstm_decoder_rollout.1} parent=1 // pred_region
      _
    $region29: #{lstm_decoder_rollout.1} parent=1 // pred_fallthru
      _
    // Predicated region
    $region30: #{lstm_decoder_rollout.1} parent=1 // pred_check
      _
    $region31: #{lstm_decoder_rollout.1} parent=1 // pred_check_branch
      %82 = sbr.rel (0) target = $region33
    $region32: #{lstm_decoder_rollout.1} parent=1 // pred_region
      %84 = dma.done [#allocation5], 128
    $region33: #{lstm_decoder_rollout.1} parent=1 // pred_fallthru
      _
    // Predicated region
    $region34: #{lstm_decoder_rollout.1} parent=1 // pred_check
      _
    $region35: #{lstm_decoder_rollout.1} parent=1 // pred_check_branch
      %86 = sbr.rel (0) target = $region37
    $region36: #{lstm_decoder_rollout.1} parent=1 // pred_region
      %88 = dma.done [#allocation8], 128
    $region37: #{lstm_decoder_rollout.1} parent=1 // pred_fallthru
      _
    // Predicated region
    $region38: #{lstm_decoder_rollout.1} parent=1 // pred_check
      _
    $region39: #{lstm_decoder_rollout.1} parent=1 // pred_check_branch
      %90 = sbr.rel (0) target = $region41
    $region40: #{lstm_decoder_rollout.1} parent=1 // pred_region
      %92 = dma.done [#allocation8], 128
    $region41: #{lstm_decoder_rollout.1} parent=1 // pred_fallthru
      _
    // Predicated region
    $region42: #{lstm_decoder_rollout.1} parent=1 // pred_check
      _
    $region43: #{lstm_decoder_rollout.1} parent=1 // pred_check_branch
      %94 = sbr.rel (0) target = $region45
    $region44: #{lstm_decoder_rollout.1} parent=1 // pred_region
      %96 = dma.done [#allocation11], 384
    $region45: #{lstm_decoder_rollout.1} parent=1 // pred_fallthru
      _
    // Predicated region
    $region46: #{lstm_decoder_rollout.1} parent=1 // pred_check
      _
    $region47: #{lstm_decoder_rollout.1} parent=1 // pred_check_branch
      %98 = sbr.rel (0) target = $region49
    $region48: #{lstm_decoder_rollout.1} parent=1 // pred_region
      %100 = dma.done [#allocation11], 256
    $region49: #{lstm_decoder_rollout.1} parent=1 // pred_fallthru
      _
    %p102 = scmp.eq.s32.totalorder 0, 0
    // Predicated region
    $region50: #{lstm_decoder_rollout.1} parent=1 // pred_check
      %p103 = pneg %p102
    $region51: #{lstm_decoder_rollout.1} parent=1 // pred_check_branch
      %105 = sbr.rel (%p103) target = $region53
    $region52: #{lstm_decoder_rollout.1} parent=1 // pred_region
      %v106 = vld [vmem:[#allocation7] sm:$0xff]
      %vm107 = vcmask 261120
      %108 = vst.msk [vmem:[#allocation2] sm:$0xff] %vm107, %v106
      %v109 = vld [vmem:[#allocation9] sm:$0xff]
      %110 = vst.msk [vmem:[#allocation3] sm:$0xff] %vm107, %v109
    $region53: #{lstm_decoder_rollout.1} parent=1 // pred_fallthru
      _
    %v111 = vld [vmem:[#allocation2] sm:$0xff]
    %v112 = vld [vmem:[#allocation3] sm:$0xff]
    %v113 = vld [vmem:[#allocation4] sm:$0xff]
    %115 = vrot.lane.b32.xlu0 %v111, 16
    %v116 = vpop.permute.xlu0 %115
    %vm118 = vcmask 130048
    %v119 = vsel %vm118, %v113, %v116
    %v120 = vpack.c.bf16 %v119, %v119
    %v121 = vld [vmem:[#allocation10] sm:$0xf]
    %v122 = vld [vmem:[#allocation10 + $0x4] sm:$0xf]
    %v123 = vld [vmem:[#allocation10 + $0x8] sm:$0xf]
    %v124 = vld [vmem:[#allocation10 + $0xc] sm:$0xf]
    %v125 = vld [vmem:[#allocation10 + $0x10] sm:$0xf]
    %v126 = vld [vmem:[#allocation10 + $0x14] sm:$0xf]
    %v127 = vld [vmem:[%s4] sm:$0x1]
    %v129 = vperm.slane %v127, 0
    %v137 = vunpack.c.l.b16 %v121
    %v138 = vunpack.c.l.b16 %v122
    %v139 = vunpack.c.l.b16 %v123
    %v140 = vunpack.c.l.b16 %v124
    %v141 = vunpack.c.l.b16 %v125
    %v142 = vunpack.c.l.b16 %v126
    %v143 = vpack.c.b16 %v138, %v137
    %v144 = vpack.c.b16 %v140, %v139
    %v145 = vpack.c.b16 %v142, %v141
    %vm149 = vcmask 392192
    %v151 = vsel %vm149, %v120, 0
    %153 = vmatpush.bf16.msra.mxu0 0
    %154 = vmatpush.bf16.msra.mxu0 0
    %155 = vmatpush.bf16.msra.mxu0 0
    %156 = vmatpush.bf16.msra.mxu0 0
    %157 = vmatpush.bf16.msra.mxu0 0
    %158 = vmatpush.bf16.msra.mxu0 %v145
    %159 = vmatpush.bf16.msra.mxu0 %v144
    %160 = vmatpush.bf16.msra.mxu0 %v143
    %161 = vmatmul.bf16.gmra.mxu0 %v151
    %v162 = vpop.f32.mrf.mxu0
    %v163 = vadd.f32 %v129, %v162
    %v164 = vpop.f32.mrf.mxu0
    %165 = vdwg.mxu0
    %v166 = vxor.u32 %v163, 2147483648
    %v167 = vmul.f32 %v166, 1.442695
    %v168 = vpow.pop %v167
    %v169 = vadd.f32 %v168, 1.0
    %v170 = vrcp.pop %v169
    %v171 = vmul.f32 %v169, %v170
    %v172 = vsub.f32 1.0, %v171
    %v173 = vmul.f32 %v170, %v172
    %v174 = vadd.f32 %v170, %v173
    %vm175 = vweird.f32 %v169
    %vm176 = vweird.f32 %v170
    %vm177 = vmor %vm175, %vm176
    %v178 = vsel %vm177, %v170, %v174
    %v179 = vand.u32 2147483647, %v169
    %vm180 = vcmp.eq.f32.partialorder %v179, 8.507059e+37
    %v181 = vand.u32 %v169, 2147483648
    %v182 = vor.u32 1.1754944e-38, %v181
    %v183 = vsel %vm180, %v182, %v178
    %v184 = vmul.f32 1.0, %v183
    %v185 = vtanh.pop %v163
    %187 = vrot.lane.b32.xlu0 %v112, 32
    %v188 = vpop.permute.xlu0 %187
    %v190 = vmul.f32 %v184, %v188
    %192 = vrot.lane.b32.xlu0 %v185, 64
    %v193 = vpop.permute.xlu0 %192
    %v195 = vmul.f32 %v184, %v193
    %197 = vrot.lane.b32.xlu0 %v195, 32
    %v198 = vpop.permute.xlu0 %197
    %v200 = vadd.f32 %v190, %v198
    %v201 = vtanh.pop %v200
    %203 = vrot.lane.b32.xlu0 %v201, 64
    %v204 = vpop.permute.xlu0 %203
    %v206 = vmul.f32 %v184, %v204
    %v207 = vpack.c.bf16 %v206, %v206
    %v208 = vld [vmem:[#allocation12] sm:$0xf]
    %v209 = vld [vmem:[#allocation12 + $0x4] sm:$0xf]
    %v210 = vld [vmem:[#allocation12 + $0x8] sm:$0xf]
    %v211 = vld [vmem:[#allocation12 + $0xc] sm:$0xf]
    %v212 = vld [vmem:[%s6] sm:$0x1]
    %v214 = vperm.slane %v212, 0
    %217 = vrot.lane.b32.xlu0 %v207, 32
    %v218 = vpop.permute.xlu0 %217
    %v223 = vunpack.c.l.b16 %v208
    %v224 = vunpack.c.l.b16 %v209
    %v225 = vunpack.c.l.b16 %v210
    %v226 = vunpack.c.l.b16 %v211
    %v227 = vpack.c.b16 %v224, %v223
    %v228 = vpack.c.b16 %v226, %v225
    %vm231 = vcmask 261120
    %v233 = vsel %vm231, %v218, 0
    %235 = vmatpush.bf16.msra.mxu0 0
    %236 = vmatpush.bf16.msra.mxu0 0
    %237 = vmatpush.bf16.msra.mxu0 0
    %238 = vmatpush.bf16.msra.mxu0 0
    %239 = vmatpush.bf16.msra.mxu0 0
    %240 = vmatpush.bf16.msra.mxu0 0
    %241 = vmatpush.bf16.msra.mxu0 %v228
    %242 = vmatpush.bf16.msra.mxu0 %v227
    %243 = vmatmul.bf16.gmra.mxu0 %v233
    %v244 = vpop.f32.mrf.mxu0
    %v245 = vadd.f32 %v214, %v244
    %v246 = vpop.f32.mrf.mxu0
    %247 = vdwg.mxu0
    %248 = vmax.xlane.f32.xlu0 %v245
    %v249 = vpop.xlane.xlu0 %248
    %v250 = vsub.f32 %v245, %v249
    %v251 = vmul.f32 %v250, 1.442695
    %v252 = vpow.pop %v251
    %253 = vadd.xlane.f32.xlu0 %v252
    %v254 = vpop.xlane.xlu0 %253
    %v255 = vrcp.pop %v254
    %v256 = vmul.f32 %v254, %v255
    %v257 = vsub.f32 1.0, %v256
    %v258 = vmul.f32 %v255, %v257
    %v259 = vadd.f32 %v255, %v258
    %vm260 = vweird.f32 %v254
    %vm261 = vweird.f32 %v255
    %vm262 = vmor %vm260, %vm261
    %v263 = vsel %vm262, %v255, %v259
    %v264 = vand.u32 2147483647, %v254
    %vm265 = vcmp.eq.f32.partialorder %v264, 8.507059e+37
    %v266 = vand.u32 %v254, 2147483648
    %v267 = vor.u32 1.1754944e-38, %v266
    %v268 = vsel %vm265, %v267, %v263
    %v269 = vmul.f32 %v252, %v268
    %270 = vst [vmem:[#allocation13] sm:$0xff] %v269
    %272 = vrot.lane.b32.xlu0 %v206, 32
    %v273 = vpop.permute.xlu0 %272
    %275 = vst.msk [vmem:[#allocation2] sm:$0xff] %vm231, %v273
    %277 = vrot.lane.b32.xlu0 %v200, 96
    %v278 = vpop.permute.xlu0 %277
    %280 = vst.msk [vmem:[#allocation3] sm:$0xff] %vm231, %v278
    // Predicated region
    $region54: #{lstm_decoder_rollout.1} parent=1 // pred_check
      %p281 = pneg %p102
    $region55: #{lstm_decoder_rollout.1} parent=1 // pred_check_branch
      %283 = sbr.rel (%p281) target = $region57
    $region56: #{lstm_decoder_rollout.1} parent=1 // pred_region
      %v284 = vsel %vm231, %v273, %v200
      %vm285 = vcmask 523264
      %v286 = vsel %vm285, %v284, 0.0
      %287 = vst [vmem:[%s8] sm:$0xff] %v286
    $region57: #{lstm_decoder_rollout.1} parent=1 // pred_fallthru
      _
    // Predicated region
    $region58: #{lstm_decoder_rollout.1} parent=1 // pred_check
      _
    $region59: #{lstm_decoder_rollout.1} parent=1 // pred_check_branch
      %289 = sbr.rel (0) target = $region61
    $region60: #{lstm_decoder_rollout.1} parent=1 // pred_region
      %291 = vsyncadd [#allocation6], 0
      %s293 = sshll.u32 [#allocation13], 4
      %s294 = int_to_ptr.vmem [resolvable:$true] %s293
      %s295 = sshll.u32 %s7, 4
      %s296 = int_to_ptr.hbm [resolvable:$true] %s295
      %298 = dma.vmem_to_hbm [thread:$0]  %s294, 128, %s296, [#allocation6]
    $region61: #{lstm_decoder_rollout.1} parent=1 // pred_fallthru
      _
    // Predicated region
    $region62: #{lstm_decoder_rollout.1} parent=1 // pred_check
      _
    $region63: #{lstm_decoder_rollout.1} parent=1 // pred_check_branch
      %300 = sbr.rel (0) target = $region65
    $region64: #{lstm_decoder_rollout.1} parent=1 // pred_region
      _
    $region65: #{lstm_decoder_rollout.1} parent=1 // pred_fallthru
      _
    // Predicated region
    $region66: #{lstm_decoder_rollout.1} parent=1 // pred_check
      _
    $region67: #{lstm_decoder_rollout.1} parent=1 // pred_check_branch
      %302 = sbr.rel (0) target = $region69
    $region68: #{lstm_decoder_rollout.1} parent=1 // pred_region
      %304 = dma.done [#allocation6], 128
    $region69: #{lstm_decoder_rollout.1} parent=1 // pred_fallthru
      _
    // Predicated region
    $region70: #{lstm_decoder_rollout.1} parent=1 // pred_check
      _
    $region71: #{lstm_decoder_rollout.1} parent=1 // pred_check_branch
      %306 = sbr.rel (0) target = $region73
    $region72: #{lstm_decoder_rollout.1} parent=1 // pred_region
      _
    $region73: #{lstm_decoder_rollout.1} parent=1 // pred_fallthru
      _
    %307 = vsyncpa [#allocation5], 1
    %308 = vsyncpa [#allocation8], 1
    %309 = vsyncpa [#allocation11], 1
    %310 = vsyncpa [#allocation6], 1

</llo_original>
